<compile_context>
chip_gen: v7x
topology: tpu7x:2x2x1
jax: 0.10.0
libtpu: 0.0.40
codegen_flags: <defaults>
</compile_context>

<pallas_src>
import functools

import jax
import jax.numpy as jnp
from jax.experimental import pallas as pl
from jax.experimental.pallas import tpu as pltpu

_MAX_TILE_BYTES = 8 << 20        # target cap per (single-buffered) input tile
_MIN_SPLIT_TILE_BYTES = 2 << 20  # don't shrink tiles below this just for core split


def _rmsnorm_kernel(x_ref, s_ref, o_ref, *, eps):
    # x_ref: (block_rows, hidden), s_ref: (1, hidden) pre-folded (offset+weight)
    # in the output dtype, o_ref: (block_rows, hidden).
    x = x_ref[...].astype(jnp.float32)
    var = jnp.mean(x * x, axis=-1, keepdims=True)
    inv_rms = jax.lax.rsqrt(var + eps)
    x_norm = (x * inv_rms).astype(o_ref.dtype)  # llama mode: cast back before scaling
    o_ref[...] = s_ref[...] * x_norm


def _round_up(n, m):
    return ((n + m - 1) // m) * m


def _tpu_topology():
    """(physical VMEM bytes, TensorCores per chip); conservative fallbacks."""
    vmem_cap = 64 << 20  # v7x-safe default
    num_cores = 1
    try:
        info = pltpu.get_tpu_info()
        cap = int(getattr(info, "vmem_capacity_bytes", 0) or 0)
        if cap > 0:
            vmem_cap = cap
        cores = 0
        for name in ("num_cores", "core_count", "num_tensorcores", "tensorcore_count"):
            v = getattr(info, name, None)
            if v:
                cores = int(v)
                break
        if cores > 0:
            num_cores = cores
        else:
            # Heuristic: 64 MiB-per-TC parts (v7x) have 2 TensorCores per chip.
            num_cores = 2 if vmem_cap <= (64 << 20) else 1
    except Exception:
        pass
    return vmem_cap, num_cores


def _pick_block_rows(rows, hidden, itemsize, vmem_budget_bytes, num_cores):
    # Sublane packing: f32 -> 8, bf16/f16 -> 16, int8/fp8 -> 32.
    pack = max(8, 32 // max(itemsize, 1))
    row_bytes = hidden * itemsize
    # Conservative per-row VMEM cost: double-buffered input + output tiles
    # (4*itemsize/elem) plus fp32 temporaries the kernel may materialize
    # (x_f32, x*x, x*inv_rms ~= 12 B/elem).
    per_row = hidden * (4 * itemsize + 12)

    # Bytes-based cap on the input tile (not a fixed row count).
    br = max(pack, ((_MAX_TILE_BYTES // max(row_bytes, 1)) // pack) * pack)
    # Total-VMEM-footprint cap.
    br = min(br, max(pack, (vmem_budget_bytes // max(per_row, 1)) // pack * pack))
    # Never larger than the packing-aligned row count.
    br = min(br, max(pack, _round_up(rows, pack)))

    if num_cores > 1 and rows > pack:
        # Megacore: aim for ~4 steps per core with >=2 MiB tiles; if the data
        # is too small for that, just give every core at least one step.
        target_steps = 4 * num_cores
        split_br = max(pack, _round_up(pl.cdiv(rows, target_steps), pack))
        if split_br * row_bytes >= _MIN_SPLIT_TILE_BYTES:
            br = min(br, split_br)
        else:
            br = min(br, max(pack, _round_up(pl.cdiv(rows, num_cores), pack)))
    return br


def liger_rms_norm(x, weight, *, eps=1e-6, offset=0.0, block_rows=None):
    """RMSNorm over the last axis of `x`, scaled by (offset + weight)."""
    hidden = x.shape[-1]
    assert weight.shape == (hidden,)
    orig_shape = x.shape
    x2d = x.reshape(-1, hidden)
    rows = x2d.shape[0]

    itemsize = jnp.dtype(x.dtype).itemsize
    vmem_cap, num_cores = _tpu_topology()

    # VMEM ceiling we are willing to ask the compiler for: <= ~80% of physical
    # and leaving >= 12 MiB of headroom for compiler-internal scratch.
    vmem_ceiling = max(32 << 20, min((vmem_cap * 4) // 5, vmem_cap - (12 << 20)))
    # Budget used for tile sizing (extra margin for the weight row + scratch).
    tile_budget = max(16 << 20, vmem_ceiling - (8 << 20))

    if block_rows is None:
        block_rows = _pick_block_rows(rows, hidden, itemsize, tile_budget, num_cores)

    # Estimated footprint of the chosen tile (conservative), with 50% headroom,
    # clamped below the ceiling.
    est = block_rows * hidden * (4 * itemsize + 12)
    est += 2 * hidden * itemsize  # double-buffered scale row
    vmem_limit = int(min(vmem_ceiling, max(32 << 20, est + est // 2)))

    # Fold (offset + weight) in the weight's dtype, then cast to the output
    # dtype — bit-matches the reference and removes per-step add/cast work.
    scale2d = (offset + weight).astype(x.dtype).reshape(1, hidden)

    # TODO(synk): for hidden < 128 (or not a multiple of 128) the output store
    # is lane-masked (vst.msk) and runs at a fraction of bandwidth; repacking
    # several rows into the lane axis would fix it but typical LLM hidden sizes
    # don't need it.

    # Partial last block (rows % block_rows != 0) is masked by Pallas on
    # writeback; rows are independent so no wrapper padding is needed.
    grid = (pl.cdiv(rows, block_rows),)

    kernel = functools.partial(_rmsnorm_kernel, eps=eps)

    out = pl.pallas_call(
        kernel,
        out_shape=jax.ShapeDtypeStruct((rows, hidden), x.dtype),
        grid_spec=pltpu.PrefetchScalarGridSpec(
            num_scalar_prefetch=0,
            grid=grid,
            in_specs=[
                pl.BlockSpec((block_rows, hidden), lambda i: (i, 0)),
                pl.BlockSpec((1, hidden), lambda i: (0, 0)),
            ],
            out_specs=pl.BlockSpec((block_rows, hidden), lambda i: (i, 0)),
        ),
        compiler_params=pltpu.CompilerParams(
            dimension_semantics=("parallel",),
            vmem_limit_bytes=vmem_limit,
        ),
    )(x2d, scale2d)

    return out.reshape(orig_shape)


def liger_rms_norm_reference(x, weight, *, eps=1e-6, offset=0.0):
    x_f32 = x.astype(jnp.float32)
    var = jnp.mean(x_f32 * x_f32, axis=-1, keepdims=True)
    x_norm = (x_f32 * jax.lax.rsqrt(var + eps)).astype(x.dtype)
    return (offset + weight).astype(x.dtype) * x_norm


if __name__ == "__main__":
    eps, offset = 1e-6, 0.0

    key = jax.random.PRNGKey(0)
    k0, k1 = jax.random.split(key)

    # Primary check: small shape consistent with the module, f32, init_fn='ones'.
    batch, seq, hidden = 2, 8, 32
    x = jax.random.normal(k0, (batch, seq, hidden), dtype=jnp.float32)
    weight = jnp.ones((hidden,), dtype=jnp.float32)

    y = liger_rms_norm(x, weight, eps=eps, offset=offset)
    jax.block_until_ready(y)
    y_ref = liger_rms_norm_reference(x, weight, eps=eps, offset=offset)
    assert y.shape == x.shape and y.dtype == x.dtype
    assert jnp.allclose(y, y_ref, atol=1e-5, rtol=1e-5), "mismatch vs reference (f32)"

    # Partial-last-block check: rows = 3*5 = 15 with block_rows=8 -> grid of 2
    # with a masked partial final block (no wrapper padding). Non-trivial weight
    # and nonzero offset.
    x2 = jax.random.normal(k1, (3, 5, 128), dtype=jnp.float32)
    w2 = 0.5 + jnp.cos(jnp.arange(128, dtype=jnp.float32))
    y2 = liger_rms_norm(x2, w2, eps=eps, offset=0.1, block_rows=8)
    jax.block_until_ready(y2)
    y2_ref = liger_rms_norm_reference(x2, w2, eps=eps, offset=0.1)
    assert jnp.allclose(y2, y2_ref, atol=1e-5, rtol=1e-5), "mismatch vs reference (partial block)"

    # bf16 activations with auto-picked (sublane-packed, bytes-capped) block_rows.
    x3 = jax.random.normal(k1, (4, 6, 128), dtype=jnp.bfloat16)
    w3 = jnp.ones((128,), dtype=jnp.float32)
    y3 = liger_rms_norm(x3, w3, eps=eps, offset=offset)
    jax.block_until_ready(y3)
    y3_ref = liger_rms_norm_reference(x3, w3, eps=eps, offset=offset)
    assert y3.dtype == jnp.bfloat16
    assert jnp.allclose(y3.astype(jnp.float32), y3_ref.astype(jnp.float32),
                        atol=2e-2, rtol=2e-2), "mismatch vs reference (bf16)"

    print("KERNEL_OK")
</pallas_src>

<mosaic_0001>
module attributes {stable_mosaic.version = 11 : i64} {
  func.func @_rmsnorm_kernel(%arg0: i32, %arg1: memref<16x32xf32, #tpu.memory_space<vmem>>, %arg2: memref<1x32xf32, #tpu.memory_space<vmem>>, %arg3: memref<16x32xf32, #tpu.memory_space<vmem>>) attributes {dimension_semantics = [#tpu.dimension_semantics<parallel>], iteration_bounds = array<i64: 1>, scalar_prefetch = 0 : i64, scratch_operands = 0 : i64, tpu.core_type = #tpu.core_type<tc>, window_params = [{transform_indices = @transform_0, window_bounds = array<i64: 16, 32>}, {pipeline_mode = #tpu.pipeline_mode<synchronous>, transform_indices = @transform_1, window_bounds = array<i64: 1, 32>}, {transform_indices = @transform_2, window_bounds = array<i64: 16, 32>}]} {
    %c0 = arith.constant 0 : index
    %c0_0 = arith.constant 0 : index
    %0 = vector.load %arg1[%c0, %c0_0] : memref<16x32xf32, #tpu.memory_space<vmem>>, vector<16x32xf32>
    %1 = arith.mulf %0, %0 : vector<16x32xf32>
    %cst = arith.constant dense<0.000000e+00> : vector<16xf32>
    %2 = vector.multi_reduction <add>, %1, %cst [1] : vector<16x32xf32> to vector<16xf32>
    %3 = vector.shape_cast %2 : vector<16xf32> to vector<16x1xf32>
    %cst_1 = arith.constant 3.200000e+01 : f32
    %4 = vector.broadcast %cst_1 : f32 to vector<16x1xf32>
    %5 = arith.divf %3, %4 : vector<16x1xf32>
    %cst_2 = arith.constant 9.99999997E-7 : f32
    %6 = vector.broadcast %cst_2 : f32 to vector<16x1xf32>
    %7 = arith.addf %5, %6 : vector<16x1xf32>
    %8 = math.rsqrt %7 : vector<16x1xf32>
    %9 = vector.broadcast %8 : vector<16x1xf32> to vector<16x32xf32>
    %10 = arith.mulf %0, %9 : vector<16x32xf32>
    %c0_3 = arith.constant 0 : index
    %c0_4 = arith.constant 0 : index
    %11 = vector.load %arg2[%c0_3, %c0_4] : memref<1x32xf32, #tpu.memory_space<vmem>>, vector<1x32xf32>
    %12 = vector.broadcast %11 : vector<1x32xf32> to vector<16x32xf32>
    %13 = arith.mulf %12, %10 : vector<16x32xf32>
    %c0_5 = arith.constant 0 : index
    %c0_6 = arith.constant 0 : index
    %14 = vector.load %arg3[%c0_5, %c0_6] : memref<16x32xf32, #tpu.memory_space<vmem>>, vector<16x32xf32>
    tpu.vector_store %arg3[%c0_5, %c0_6], %13 {strides = array<i32>} : memref<16x32xf32, #tpu.memory_space<vmem>>, vector<16x32xf32>,
    return
  }
  func.func @transform_0(%arg0: i32) -> (i32, i32) {
    %c0_i32 = arith.constant 0 : i32
    %c0_i32_0 = arith.constant 0 : i32
    return %arg0, %c0_i32 : i32, i32
  }
  func.func @transform_1(%arg0: i32) -> (i32, i32) {
    %c0_i32 = arith.constant 0 : i32
    %c0_i32_0 = arith.constant 0 : i32
    %c0_i32_1 = arith.constant 0 : i32
    return %c0_i32, %c0_i32_0 : i32, i32
  }
  func.func @transform_2(%arg0: i32) -> (i32, i32) {
    %c0_i32 = arith.constant 0 : i32
    %c0_i32_0 = arith.constant 0 : i32
    return %arg0, %c0_i32 : i32, i32
  }
}

</mosaic_0001>

<llo_original>
// kernel: tpu_custom_call.1
$region0: #{tpu_custom_call.1}
  #allocation0 [shape = 'u32[]', space=smem, size = 0x4, offset = 0x4, fixed_abs, tag = 'smem constant byte address 0x4 - core index']
  #allocation1 [shape = 'u32[144,128]{1,0:T(1,128)}', space=vmem, size = 0x12000, scoped, tag = 'internal scratch']
  %s0 = inlined_call_operand.hbm [shape: f32[16,32], index: 0, kind: input, shape index: {}]
  %s1 = inlined_call_operand.vmem [shape: f32[1,32], index: 1, kind: input, shape index: {}]
  %s2 = inlined_call_operand.hbm [shape: f32[16,32], index: 2, kind: output, shape index: {}]
  %s3 = sld [smem:[#allocation0]]
  $region22: #{tpu_custom_call.1} parent=0
    _
  %s5 = ssub.s32 1, %s3
  %s6 = scalar_select 0, %s5, %s3
  $region1: #{tpu_custom_call.1} parent=0
    #allocation2 [shape = 'u8[8192]{0}', space=vmem, size = 0x2000, scoped, tag = 'input window, operand 0, single buffered']
    #allocation3 [shape = 's32[1]{0}', space=sflag, size = 0x4, scoped, tag = 'scoped memory for tpu_custom_call.1']
    #allocation4 [shape = 's32[1]{0}', space=sflag, size = 0x4, scoped, tag = 'scoped memory for tpu_custom_call.1']
    #allocation5 [shape = 'u8[8192]{0}', space=vmem, size = 0x2000, scoped, tag = 'output window, operand 0, single buffered']
    %7 = vsyncpa [#allocation3], 0
    %8 = vsyncpa [#allocation4], 0
    // Predicated region
    $region2: #{tpu_custom_call.1} parent=1 // pred_check
      _
    $region3: #{tpu_custom_call.1} parent=1 // pred_check_branch
      %10 = sbr.rel (0) target = $region5
    $region4: #{tpu_custom_call.1} parent=1 // pred_region
      %s12 = ssub.s32 256, 256
      %13 = vsyncadd [#allocation3], %s12
      %s14 = sshll.u32 [#allocation2], 4
      %s15 = int_to_ptr.vmem [resolvable:$true] %s14
      %20 = dma.hbm_to_vmem [thread:$0]  %s0, 256, %s15, [#allocation3], 128, 128, 8
    $region5: #{tpu_custom_call.1} parent=1 // pred_fallthru
      _
    // Predicated region
    $region6: #{tpu_custom_call.1} parent=1 // pred_check
      _
    $region7: #{tpu_custom_call.1} parent=1 // pred_check_branch
      %22 = sbr.rel (0) target = $region9
    $region8: #{tpu_custom_call.1} parent=1 // pred_region
      _
    $region9: #{tpu_custom_call.1} parent=1 // pred_fallthru
      _
    // Predicated region
    $region10: #{tpu_custom_call.1} parent=1 // pred_check
      _
    $region11: #{tpu_custom_call.1} parent=1 // pred_check_branch
      %24 = sbr.rel (0) target = $region13
    $region12: #{tpu_custom_call.1} parent=1 // pred_region
      %25 = dma.done [#allocation3], 256
    $region13: #{tpu_custom_call.1} parent=1 // pred_fallthru
      _
    %v26 = vld [vmem:[#allocation2] sm:$0xff]
    %v27 = vld [vmem:[#allocation2 + $0x8] sm:$0xff]
    %v28 = vmul.f32 %v26, %v26
    %v29 = vmul.f32 %v27, %v27
    %vm30 = vcmask 261120
    %v31 = vsel %vm30, %v28, 0.0
    %32 = vadd.xlane.f32.xlu0 %v31
    %v33 = vpop.xlane.xlu0 %32
    %v34 = vsel %vm30, %v29, 0.0
    %35 = vadd.xlane.f32.xlu0 %v34
    %v36 = vpop.xlane.xlu0 %35
    %v37 = vrcp.pop 32.0
    %v38 = vmul.f32 %v33, %v37
    %v39 = vmul.f32 %v36, %v37
    %v40 = vadd.f32 %v38, 1e-06
    %v41 = vadd.f32 %v39, 1e-06
    %v42 = vrsqrt.pop %v40
    %v43 = vrsqrt.pop %v41
    %v44 = vmul.f32 %v26, %v42
    %v45 = vmul.f32 %v27, %v43
    %v46 = vld [vmem:[%s1] sm:$0x1]
    %v48 = vlaneseq
    %v49 = vshrl.u32 %v48, 7
    %v50 = vsub.s32 0, %v49
    %v51 = vrot.slane %v46, %v50
    %v53 = vmul.f32 %v51, %v44
    %v54 = vmul.f32 %v51, %v45
    %55 = vst.msk [vmem:[#allocation5] sm:$0xff] %vm30, %v53
    %56 = vst.msk [vmem:[#allocation5 + $0x8] sm:$0xff] %vm30, %v54
    // Predicated region
    $region14: #{tpu_custom_call.1} parent=1 // pred_check
      _
    $region15: #{tpu_custom_call.1} parent=1 // pred_check_branch
      %58 = sbr.rel (0) target = $region17
    $region16: #{tpu_custom_call.1} parent=1 // pred_region
      %s60 = ssub.s32 256, 256
      %61 = vsyncadd [#allocation4], %s60
      %s62 = sshll.u32 [#allocation5], 4
      %s63 = int_to_ptr.vmem [resolvable:$true] %s62
      %68 = dma.vmem_to_hbm [thread:$0]  %s63, 256, %s2, [#allocation4], 128, 128, 8
    $region17: #{tpu_custom_call.1} parent=1 // pred_fallthru
      _
    // Predicated region
    $region18: #{tpu_custom_call.1} parent=1 // pred_check
      _
    $region19: #{tpu_custom_call.1} parent=1 // pred_check_branch
      %70 = sbr.rel (0) target = $region21
    $region20: #{tpu_custom_call.1} parent=1 // pred_region
      %71 = dma.done [#allocation4], 256
    $region21: #{tpu_custom_call.1} parent=1 // pred_fallthru
      _
    %72 = vsyncpa [#allocation3], 1
    %73 = vsyncpa [#allocation4], 1

</llo_original>
